<compile_context>
chip_gen: v6e
topology: v6e:2x2x1
jax: 0.10.0
libtpu: 0.0.40
codegen_flags: <defaults>
</compile_context>

<pallas_src>
import functools

import jax
import jax.numpy as jnp
from jax import lax
from jax.experimental import pallas as pl
from jax.experimental.pallas import tpu as pltpu


def _round_up(v, m):
    return (v + m - 1) // m * m


def _vmem_limits():
    """Generation-aware (working-set budget, vmem_limit_bytes)."""
    cap = 128 * 1024 * 1024
    try:
        info = pltpu.get_tpu_info()
        cap = int(getattr(info, "vmem_capacity_bytes", cap))
    except Exception:
        pass
    if cap <= 64 * 1024 * 1024:                      # v7x: 64 MiB per TensorCore
        return 24 * 1024 * 1024, 48 * 1024 * 1024
    return 40 * 1024 * 1024, 96 * 1024 * 1024        # v5e / v6e: 128 MiB physical


def _pick_row_tile(n, c, in_bytes, chunk, budget):
    """Biggest row tile whose VMEM working set stays under `budget`."""
    c_pad = _round_up(c, 128)                        # VMEM lane-pads the class axis
    # Fixed live set: ~6 (chunk, C) f32 intermediates inside the fori_loop + slack
    # (output blocks, accumulators, misc).
    fixed = 6 * chunk * c_pad * 4 + 256 * 1024
    # Per DMA'd row: double-buffered x block + lane-padded (row_tile, 1) int32 target
    # block (2 buffers x 128 lanes x 4 B ~= 1 KiB/row).
    per_row = 2 * c_pad * in_bytes + 1024
    avail = budget - fixed
    rt = avail // per_row if avail > per_row * chunk else chunk
    # Cap by bytes, not a fixed row count: keep the x block MiB-scale but bounded.
    cap_rows = max(2048, (4 * 1024 * 1024) // max(c * in_bytes, 1))
    rt = min(rt, cap_rows, _round_up(n, chunk))
    rt = max(chunk, rt // chunk * chunk)
    return int(rt)


def _lsce_kernel(x_ref, tgt_ref, out_ref, *, confidence, smoothing, num_classes,
                 n_rows, chunk, num_chunks):
    base = smoothing / num_classes
    row_tile = x_ref.shape[0]
    tile_row0 = pl.program_id(0) * row_tile

    def chunk_body(j, acc):
        r0 = pl.multiple_of(j * chunk, chunk)
        x = x_ref[pl.ds(r0, chunk), :].astype(jnp.float32)                 # (chunk, C)
        tgt = tgt_ref[pl.ds(r0, chunk), :]                                 # (chunk, 1)
        m = jnp.max(x, axis=-1, keepdims=True)
        shifted = x - m
        log_z = jnp.log(jnp.sum(jnp.exp(shifted), axis=-1, keepdims=True))  # (chunk, 1)
        cls = lax.broadcasted_iota(jnp.int32, shifted.shape, 1)
        sum_shift = jnp.sum(shifted, axis=-1, keepdims=True)
        tgt_shift = jnp.sum(jnp.where(cls == tgt, shifted, 0.0),
                            axis=-1, keepdims=True)
        # Smoothing weights sum to 1 -> the row max m cancels exactly.
        loss = log_z - (base * sum_shift + confidence * tgt_shift)          # (chunk, 1)
        # Mask rows past N: the ragged last tile reads undefined data, so zero those
        # rows BEFORE accumulating the partial sum (select kills any NaN/inf too).
        row = tile_row0 + r0 + lax.broadcasted_iota(jnp.int32, loss.shape, 0)
        loss = jnp.where(row < n_rows, loss, 0.0)
        return acc + jnp.sum(loss, keepdims=True)                           # (1, 1)

    total = lax.fori_loop(0, num_chunks, chunk_body,
                          jnp.zeros((1, 1), jnp.float32))
    # Lane-dense (1, 8, 128) output block -> unmasked full-width stores; the wrapper
    # reads element [i, 0, 0] of each tile's block.
    out_ref[...] = jnp.broadcast_to(total.reshape(1, 1, 1), out_ref.shape)


def label_smoothing_cross_entropy(x, target, smoothing=0.0, *, row_tile=None, chunk=256):
    """x: (N, C) float logits (f32 or bf16); target: (N,) int labels. Returns scalar mean loss."""
    N, C = x.shape
    confidence = 1.0 - smoothing
    budget, vmem_limit = _vmem_limits()

    c_pad = _round_up(C, 128)
    # Cap the per-chunk f32 intermediates at ~half the budget; never larger than N.
    max_chunk = max(8, (budget // 2) // (6 * c_pad * 4))
    chunk = max(8, min(int(chunk), max_chunk, _round_up(N, 8)) // 8 * 8)

    if row_tile is None:
        row_tile = _pick_row_tile(N, C, x.dtype.itemsize, chunk, budget)
    else:
        row_tile = max(8, int(row_tile) // 8 * 8)
        chunk = min(chunk, row_tile)
        row_tile = _round_up(row_tile, chunk)
    num_chunks = row_tile // chunk
    num_tiles = (N + row_tile - 1) // row_tile       # ragged last tile masked in-kernel

    tgt2d = target.astype(jnp.int32).reshape(N, 1)

    kernel = functools.partial(
        _lsce_kernel,
        confidence=float(confidence),
        smoothing=float(smoothing),
        num_classes=int(C),
        n_rows=int(N),
        chunk=int(chunk),
        num_chunks=int(num_chunks),
    )

    # TODO(synk): for vocab-scale C where even an 8-row chunk of f32 intermediates no
    # longer fits VMEM, add a second ("arbitrary") class-tile grid axis with an online
    # logsumexp and running weighted-sum kept in (chunk, 1) scratch.
    partials = pl.pallas_call(
        kernel,
        out_shape=jax.ShapeDtypeStruct((num_tiles, 8, 128), jnp.float32),
        grid_spec=pltpu.PrefetchScalarGridSpec(
            num_scalar_prefetch=0,
            grid=(num_tiles,),
            in_specs=[
                pl.BlockSpec((row_tile, C), lambda i: (i, 0)),
                pl.BlockSpec((row_tile, 1), lambda i: (i, 0)),
            ],
            out_specs=pl.BlockSpec((1, 8, 128), lambda i: (i, 0, 0)),
        ),
        compiler_params=pltpu.CompilerParams(
            # Each grid step writes its own partial-sum block -> fully independent.
            # TODO(synk): on v7x, verify the row axis shards across both TensorCores;
            # switch to (pltpu.CORE_PARALLEL,) if plain "parallel" does not.
            dimension_semantics=("parallel",),
            vmem_limit_bytes=vmem_limit,
        ),
    )(x, tgt2d)

    # Tiny final reduction in XLA (a few tiles' worth of scalars).
    return jnp.sum(partials[:, 0, 0]) / jnp.float32(N)


def _reference(x, target, smoothing):
    """Pure-JAX reference mirroring the PyTorch module."""
    confidence = 1.0 - smoothing
    logprobs = jax.nn.log_softmax(x.astype(jnp.float32), axis=-1)
    nll = -jnp.take_along_axis(logprobs, target[:, None].astype(jnp.int32), axis=-1)[:, 0]
    smooth = -jnp.mean(logprobs, axis=-1)
    return jnp.mean(confidence * nll + smoothing * smooth)


if __name__ == "__main__":
    key = jax.random.PRNGKey(0)
    kx, kt = jax.random.split(key)

    # Small demo shape consistent with the module: 16 examples, 32 classes.
    N, C = 16, 32
    smoothing = 0.1
    x = jax.random.normal(kx, (N, C), dtype=jnp.float32)
    target = jax.random.randint(kt, (N,), 0, C, dtype=jnp.int32)

    loss = jax.block_until_ready(label_smoothing_cross_entropy(x, target, smoothing=smoothing))
    ref = _reference(x, target, smoothing)
    assert jnp.allclose(loss, ref, atol=1e-5, rtol=1e-5), (loss, ref)

    # N not a multiple of the (forced small) row tile -> several parallel grid steps
    # plus a ragged last block whose out-of-bounds rows are masked in-kernel
    # (no host-side jnp.pad of x anymore).
    N2, C2 = 50, 160
    x2 = jax.random.normal(jax.random.PRNGKey(1), (N2, C2), dtype=jnp.float32)
    t2 = jax.random.randint(jax.random.PRNGKey(2), (N2,), 0, C2, dtype=jnp.int32)
    loss2 = jax.block_until_ready(
        label_smoothing_cross_entropy(x2, t2, smoothing=0.2, row_tile=16))
    ref2 = _reference(x2, t2, 0.2)
    assert jnp.allclose(loss2, ref2, atol=1e-5, rtol=1e-5), (loss2, ref2)

    # bf16 logits, single tile with several in-kernel sub-chunks (exercises the
    # fori_loop chunking and the tail mask inside the last chunk).
    N3, C3 = 600, 384
    x3 = jax.random.normal(jax.random.PRNGKey(3), (N3, C3), dtype=jnp.bfloat16)
    t3 = jax.random.randint(jax.random.PRNGKey(4), (N3,), 0, C3, dtype=jnp.int32)
    loss3 = jax.block_until_ready(label_smoothing_cross_entropy(x3, t3, smoothing=0.1))
    ref3 = _reference(x3, t3, 0.1)
    assert jnp.allclose(loss3, ref3, atol=1e-4, rtol=1e-4), (loss3, ref3)

    print("KERNEL_OK")
</pallas_src>

<mosaic_0001>
module attributes {stable_mosaic.version = 11 : i64} {
  func.func @_lsce_kernel(%arg0: i32, %arg1: memref<16x32xf32, #tpu.memory_space<vmem>>, %arg2: memref<16x1xi32, #tpu.memory_space<vmem>>, %arg3: memref<1x8x128xf32, #tpu.memory_space<vmem>>) attributes {dimension_semantics = [#tpu.dimension_semantics<parallel>], iteration_bounds = array<i64: 1>, scalar_prefetch = 0 : i64, scratch_operands = 0 : i64, tpu.core_type = #tpu.core_type<tc>, window_params = [{transform_indices = @transform_0, window_bounds = array<i64: 16, 32>}, {transform_indices = @transform_1, window_bounds = array<i64: 16, 1>}, {transform_indices = @transform_2, window_bounds = array<i64: 1, 8, 128>}]} {
    %c16_i32 = arith.constant 16 : i32
    %0 = arith.muli %arg0, %c16_i32 : i32
    %cst = arith.constant 0.000000e+00 : f32
    %1 = vector.broadcast %cst : f32 to vector<1x1xf32>
    %c0_i32 = arith.constant 0 : i32
    %c16_i32_0 = arith.constant 16 : i32
    %2 = arith.muli %c0_i32, %c16_i32_0 : i32
    %3 = tpu.assume_multiple %2, 16 : i32
    %4 = arith.index_cast %3 : i32 to index
    %c0 = arith.constant 0 : index
    %5 = vector.load %arg1[%4, %c0] : memref<16x32xf32, #tpu.memory_space<vmem>>, vector<16x32xf32>
    %6 = arith.index_cast %3 : i32 to index
    %c0_1 = arith.constant 0 : index
    %7 = vector.load %arg2[%6, %c0_1] : memref<16x1xi32, #tpu.memory_space<vmem>>, vector<16x1xi32>
    %cst_2 = arith.constant dense<0xFF800000> : vector<16xf32>
    %8 = vector.multi_reduction <maximumf>, %5, %cst_2 [1] : vector<16x32xf32> to vector<16xf32>
    %9 = vector.shape_cast %8 : vector<16xf32> to vector<16x1xf32>
    %10 = vector.broadcast %9 : vector<16x1xf32> to vector<16x32xf32>
    %11 = arith.subf %5, %10 : vector<16x32xf32>
    %12 = math.exp %11 : vector<16x32xf32>
    %cst_3 = arith.constant dense<0.000000e+00> : vector<16xf32>
    %13 = vector.multi_reduction <add>, %12, %cst_3 [1] : vector<16x32xf32> to vector<16xf32>
    %14 = vector.shape_cast %13 : vector<16xf32> to vector<16x1xf32>
    %15 = math.log %14 : vector<16x1xf32>
    %16 = tpu.iota {dimensions = array<i32: 1>} : vector<16x32xi32>
    %cst_4 = arith.constant dense<0.000000e+00> : vector<16xf32>
    %17 = vector.multi_reduction <add>, %11, %cst_4 [1] : vector<16x32xf32> to vector<16xf32>
    %18 = vector.shape_cast %17 : vector<16xf32> to vector<16x1xf32>
    %19 = vector.broadcast %7 : vector<16x1xi32> to vector<16x32xi32>
    %20 = arith.cmpi eq, %16, %19 : vector<16x32xi32>
    %cst_5 = arith.constant 0.000000e+00 : f32
    %21 = vector.broadcast %cst_5 : f32 to vector<16x32xf32>
    %22 = arith.select %20, %11, %21 : vector<16x32xi1>, vector<16x32xf32>
    %cst_6 = arith.constant dense<0.000000e+00> : vector<16xf32>
    %23 = vector.multi_reduction <add>, %22, %cst_6 [1] : vector<16x32xf32> to vector<16xf32>
    %24 = vector.shape_cast %23 : vector<16xf32> to vector<16x1xf32>
    %cst_7 = arith.constant 3.125000e-03 : f32
    %25 = vector.broadcast %cst_7 : f32 to vector<16x1xf32>
    %26 = arith.mulf %25, %18 : vector<16x1xf32>
    %cst_8 = arith.constant 0.899999976 : f32
    %27 = vector.broadcast %cst_8 : f32 to vector<16x1xf32>
    %28 = arith.mulf %27, %24 : vector<16x1xf32>
    %29 = arith.addf %26, %28 : vector<16x1xf32>
    %30 = arith.subf %15, %29 : vector<16x1xf32>
    %31 = arith.addi %0, %3 : i32
    %32 = tpu.iota {dimensions = array<i32: 0>} : vector<16x1xi32>
    %33 = vector.broadcast %31 : i32 to vector<16x1xi32>
    %34 = arith.addi %33, %32 : vector<16x1xi32>
    %c16_i32_9 = arith.constant 16 : i32
    %35 = vector.broadcast %c16_i32_9 : i32 to vector<16x1xi32>
    %36 = arith.cmpi slt, %34, %35 : vector<16x1xi32>
    %cst_10 = arith.constant 0.000000e+00 : f32
    %37 = vector.broadcast %cst_10 : f32 to vector<16x1xf32>
    %38 = arith.select %36, %30, %37 : vector<16x1xi1>, vector<16x1xf32>
    %39 = vector.shape_cast %38 : vector<16x1xf32> to vector<1x16x1xf32>
    %cst_11 = arith.constant dense<0.000000e+00> : vector<1xf32>
    %40 = vector.multi_reduction <add>, %39, %cst_11 [1, 2] : vector<1x16x1xf32> to vector<1xf32>
    %41 = vector.shape_cast %40 : vector<1xf32> to vector<1x1x1xf32>
    %42 = vector.extract %41[0, 0, 0] : f32 from vector<1x1x1xf32>
    %43 = vector.broadcast %42 : f32 to vector<1x1xf32>
    %44 = arith.addf %1, %43 : vector<1x1xf32>
    %c1_i32 = arith.constant 1 : i32
    %45 = vector.shape_cast %44 : vector<1x1xf32> to vector<1x1x1xf32>
    %46 = vector.shape_cast %45 : vector<1x1x1xf32> to vector<1x1x1xf32>
    %47 = vector.broadcast %46 : vector<1x1x1xf32> to vector<1x8x128xf32>
    %c0_12 = arith.constant 0 : index
    %c0_13 = arith.constant 0 : index
    %c0_14 = arith.constant 0 : index
    %48 = vector.load %arg3[%c0_12, %c0_13, %c0_14] : memref<1x8x128xf32, #tpu.memory_space<vmem>>, vector<1x8x128xf32>
    tpu.vector_store %arg3[%c0_12, %c0_13, %c0_14], %47 {strides = array<i32>} : memref<1x8x128xf32, #tpu.memory_space<vmem>>, vector<1x8x128xf32>,
    return
  }
  func.func @transform_0(%arg0: i32) -> (i32, i32) {
    %c0_i32 = arith.constant 0 : i32
    %c0_i32_0 = arith.constant 0 : i32
    return %arg0, %c0_i32 : i32, i32
  }
  func.func @transform_1(%arg0: i32) -> (i32, i32) {
    %c0_i32 = arith.constant 0 : i32
    %c0_i32_0 = arith.constant 0 : i32
    return %arg0, %c0_i32 : i32, i32
  }
  func.func @transform_2(%arg0: i32) -> (i32, i32, i32) {
    %c0_i32 = arith.constant 0 : i32
    %c0_i32_0 = arith.constant 0 : i32
    %c0_i32_1 = arith.constant 0 : i32
    return %arg0, %c0_i32, %c0_i32_0 : i32, i32, i32
  }
}

</mosaic_0001>

<llo_original>
// kernel: tpu_custom_call.1
$region0: #{tpu_custom_call.1}
  #allocation0 [shape = 'u32[]', space=smem, size = 0x4, offset = 0x4, fixed_abs, tag = 'smem constant byte address 0x4 - core index']
  #allocation1 [shape = 'u32[144,128]{1,0:T(1,128)}', space=vmem, size = 0x12000, scoped, tag = 'internal scratch']
  %s0 = inlined_call_operand.vmem [shape: f32[16,32], index: 0, kind: input, shape index: {}]
  %s1 = inlined_call_operand.vmem [shape: s32[16,1], index: 1, kind: input, shape index: {}]
  %s2 = inlined_call_operand.hbm [shape: f32[1,8,128], index: 2, kind: output, shape index: {}]
  %s3 = sld [smem:[#allocation0]]
  $region18: #{tpu_custom_call.1} parent=0
    _
  %s5 = ssub.s32 1, %s3
  %s6 = scalar_select 0, %s5, %s3
  $region1: #{tpu_custom_call.1} parent=0
    #allocation2 [shape = 'u8[4096]{0}', space=vmem, size = 0x1000, scoped, tag = 'output window, operand 0, single buffered']
    #allocation3 [shape = 's32[1]{0}', space=sflag, size = 0x4, scoped, tag = 'scoped memory for tpu_custom_call.1']
    %7 = vsyncpa [#allocation3], 0
    // Predicated region
    $region2: #{tpu_custom_call.1} parent=1 // pred_check
      _
    $region3: #{tpu_custom_call.1} parent=1 // pred_check_branch
      %9 = sbr.rel (0) target = $region5
    $region4: #{tpu_custom_call.1} parent=1 // pred_region
      _
    $region5: #{tpu_custom_call.1} parent=1 // pred_fallthru
      _
    // Predicated region
    $region6: #{tpu_custom_call.1} parent=1 // pred_check
      _
    $region7: #{tpu_custom_call.1} parent=1 // pred_check_branch
      %11 = sbr.rel (0) target = $region9
    $region8: #{tpu_custom_call.1} parent=1 // pred_region
      _
    $region9: #{tpu_custom_call.1} parent=1 // pred_fallthru
      _
    %s12 = smul.u32 0, 16
    %v13 = vld [vmem:[%s0] sm:$0xff]
    %v14 = vld [vmem:[%s0 + $0x8] sm:$0xff]
    %v15 = vld [vmem:[%s1] sm:$0xff]
    %v16 = vld [vmem:[%s1 + $0x8] sm:$0xff]
    %vm17 = vcmask 261120
    %v18 = vsel %vm17, %v13, -inf
    %19 = vmax.xlane.f32.xlu0 %v18
    %v20 = vpop.xlane.xlu0 %19
    %v21 = vsel %vm17, %v14, -inf
    %22 = vmax.xlane.f32.xlu0 %v21
    %v23 = vpop.xlane.xlu0 %22
    %v24 = vsub.f32 %v13, %v20
    %v25 = vsub.f32 %v14, %v23
    %v26 = vmul.f32 %v24, 1.442695
    %v27 = vpow.pop %v26
    %v28 = vmul.f32 %v25, 1.442695
    %v29 = vpow.pop %v28
    %v30 = vsel %vm17, %v27, 0.0
    %31 = vadd.xlane.f32.xlu0 %v30
    %v32 = vpop.xlane.xlu0 %31
    %v33 = vsel %vm17, %v29, 0.0
    %34 = vadd.xlane.f32.xlu0 %v33
    %v35 = vpop.xlane.xlu0 %34
    %v36 = vlog2.pop %v32
    %v37 = vmul.f32 %v36, 0.6931472
    %v38 = vlog2.pop %v35
    %v39 = vmul.f32 %v38, 0.6931472
    %v40 = vlaneseq
    %v41 = vand.u32 %v40, 127
    %v42 = vsel %vm17, %v24, 0.0
    %43 = vadd.xlane.f32.xlu0 %v42
    %v44 = vpop.xlane.xlu0 %43
    %v45 = vsel %vm17, %v25, 0.0
    %46 = vadd.xlane.f32.xlu0 %v45
    %v47 = vpop.xlane.xlu0 %46
    %48 = vset.pattern.permute.xlu0 0
    %49 = vperm.xlu0 %48, %v15
    %v50 = vpop.permute.xlu0 %49
    %51 = vset.pattern.permute.xlu0 0
    %52 = vperm.xlu0 %51, %v16
    %v53 = vpop.permute.xlu0 %52
    %vm54 = vcmp.eq.s32.totalorder %v41, %v50
    %vm55 = vcmp.eq.s32.totalorder %v41, %v53
    %v56 = vsel %vm54, %v24, 0.0
    %v57 = vsel %vm55, %v25, 0.0
    %v58 = vsel %vm17, %v56, 0.0
    %59 = vadd.xlane.f32.xlu0 %v58
    %v60 = vpop.xlane.xlu0 %59
    %v61 = vsel %vm17, %v57, 0.0
    %62 = vadd.xlane.f32.xlu0 %v61
    %v63 = vpop.xlane.xlu0 %62
    %v64 = vmul.f32 %v44, 0.003125
    %v65 = vmul.f32 %v47, 0.003125
    %v66 = vmul.f32 %v60, 0.9
    %v67 = vmul.f32 %v63, 0.9
    %v68 = vadd.f32 %v64, %v66
    %v69 = vadd.f32 %v65, %v67
    %v70 = vsub.f32 %v37, %v68
    %v71 = vsub.f32 %v39, %v69
    %s72 = sadd.s32 %s12, 0
    %v73 = vlaneseq
    %v74 = vshrl.u32 %v73, 7
    %v75 = vadd.s32 %v74, 8
    %v76 = vstv %s72
    %v77 = vadd.s32 %v76, %v74
    %v78 = vadd.s32 %v76, %v75
    %vm79 = vcmp.lt.s32.totalorder %v77, 16
    %vm80 = vcmp.lt.s32.totalorder %v78, 16
    %v81 = vsel %vm79, %v70, 0.0
    %v82 = vsel %vm80, %v71, 0.0
    %vm83 = vcmask 7168
    %v84 = vsel %vm83, %v81, 0.0
    %v85 = vsel %vm83, %v82, 0.0
    %v86 = vadd.f32 %v84, %v85
    %87 = vadd.xlane.f32.xlu0 %v86
    %v88 = vpop.xlane.xlu0 %87
    %v89 = vrot.slane %v88, 4
    %v90 = vadd.f32 %v88, %v89
    %v91 = vrot.slane %v90, 2
    %v92 = vadd.f32 %v90, %v91
    %v93 = vrot.slane %v92, 1
    %v94 = vadd.f32 %v92, %v93
    %s95 = vtos %v94
    %v96 = vstv %s95
    %v97 = vadd.f32 %v96, 0.0
    %98 = vst [vmem:[#allocation2] sm:$0xff] %v97
    // Predicated region
    $region10: #{tpu_custom_call.1} parent=1 // pred_check
      _
    $region11: #{tpu_custom_call.1} parent=1 // pred_check_branch
      %100 = sbr.rel (0) target = $region13
    $region12: #{tpu_custom_call.1} parent=1 // pred_region
      %s102 = ssub.s32 128, 128
      %103 = vsyncadd [#allocation3], %s102
      %s105 = sshll.u32 [#allocation2], 4
      %s106 = int_to_ptr.vmem [resolvable:$true] %s105
      %108 = dma.vmem_to_hbm [thread:$0]  %s106, 128, %s2, [#allocation3]
    $region13: #{tpu_custom_call.1} parent=1 // pred_fallthru
      _
    // Predicated region
    $region14: #{tpu_custom_call.1} parent=1 // pred_check
      _
    $region15: #{tpu_custom_call.1} parent=1 // pred_check_branch
      %110 = sbr.rel (0) target = $region17
    $region16: #{tpu_custom_call.1} parent=1 // pred_region
      %111 = dma.done [#allocation3], 128
    $region17: #{tpu_custom_call.1} parent=1 // pred_fallthru
      _
    %112 = vsyncpa [#allocation3], 1

</llo_original>
